<compile_context>
chip_gen: v5e
topology: v5e:2x2
jax: 0.10.0
libtpu: 0.0.40
codegen_flags: <defaults>
</compile_context>

<pallas_src>
import functools

import jax
import jax.numpy as jnp
from jax import lax
from jax.experimental import pallas as pl
from jax.experimental.pallas import tpu as pltpu


def _tpu_vmem_capacity_bytes():
    try:
        return int(pltpu.get_tpu_info().vmem_capacity_bytes)
    except Exception:
        return 64 << 20          # conservative fallback (v7x-sized VMEM)


def _attn_body(gamma_ref, x_ref, khat_ref, row_ref, v_ref, out_ref, attn_ref,
               *, n_actual):
    """One (batch, query-tile) step.

    x_ref    : (C, TQ)  f32   query/residual tile
    khat_ref : (C, Np)  bf16  per-batch (Wq^T Wk) x + Wq^T bk
    row_ref  : (1, Np)  f32   per-batch bq^T (Wk x + bk)
    v_ref    : (C, Np)  bf16  per-batch Wv x + bv
    out_ref  : (C, TQ)  f32
    attn_ref : (TQ, Np) or None
    """
    bf16 = jnp.bfloat16
    x_tile = x_ref[...]                                     # (C, TQ) f32

    # energy[i, j] = q_i . k_j  (query/key 1x1 convs folded into khat/row);
    # transpose folded into contraction dims -> no XLU transpose.
    energy = lax.dot_general(
        x_tile.astype(bf16), khat_ref[...],
        dimension_numbers=(((0,), (0,)), ((), ())),
        preferred_element_type=jnp.float32) + row_ref[...]  # (TQ, Np)

    if n_actual != energy.shape[-1]:
        # Static branch: mask zero-padded key columns out of the softmax.
        col = lax.broadcasted_iota(jnp.int32, energy.shape, 1)
        energy = jnp.where(col < n_actual, energy, -jnp.inf)

    # Numerically stable softmax over keys (f32); reciprocal on the EUP slot.
    e_max = jnp.max(energy, axis=-1, keepdims=True)
    p = jnp.exp(energy - e_max)
    attn = p * pl.reciprocal(jnp.sum(p, axis=-1, keepdims=True), approx=True)

    # out[c, i] = sum_j v[c, j] * attn[i, j]                (C, TQ)
    out = lax.dot_general(
        v_ref[...], attn.astype(bf16),
        dimension_numbers=(((1,), (1,)), ((), ())),
        preferred_element_type=jnp.float32)

    out_ref[...] = gamma_ref[0] * out + x_tile              # residual in f32

    if attn_ref is not None:
        attn_ref[...] = attn.astype(attn_ref.dtype)


def _kernel_with_attn(gamma_ref, x_ref, khat_ref, row_ref, v_ref,
                      out_ref, attn_ref, *, n_actual):
    _attn_body(gamma_ref, x_ref, khat_ref, row_ref, v_ref, out_ref, attn_ref,
               n_actual=n_actual)


def _kernel_no_attn(gamma_ref, x_ref, khat_ref, row_ref, v_ref,
                    out_ref, *, n_actual):
    _attn_body(gamma_ref, x_ref, khat_ref, row_ref, v_ref, out_ref, None,
               n_actual=n_actual)


def self_attn_2d(x, wq, bq, wk, bk, wv, bv, gamma, *,
                 return_attention=True, attn_dtype=jnp.float32, tq=None):
    """Self_Attn2D forward.

    x: (B, C, W, H); wq/wk: (C//8, C); bq/bk: (C//8,); wv: (C, C); bv: (C,);
    gamma: scalar-like.  Returns (out (B, C, W, H), attention (B, N, N)) with
    N = W*H; attention is None when return_attention=False.
    """
    B, C, W, H = x.shape
    N = W * H
    f32, bf16 = jnp.float32, jnp.bfloat16

    vmem_cap = _tpu_vmem_capacity_bytes()
    if tq is None:
        # Larger query tile on 128-MiB-VMEM parts (v5e/v6e); 128 on v7x.
        tq = 256 if vmem_cap >= (128 << 20) else 128
    vmem_limit = int(min((vmem_cap * 3) // 4, 100 << 20))

    n_pad = ((N + tq - 1) // tq) * tq        # lane-dense, tile-aligned spatial axis
    nq = n_pad // tq

    x_flat = x.reshape(B, C, N).astype(f32)
    if n_pad != N:
        x_flat = jnp.pad(x_flat, ((0, 0), (0, 0), (0, n_pad - N)))

    # --- Hoisted per-batch projections (done once, outside the q-tile loop) ---
    wq32, wk32 = wq.astype(f32), wk.astype(f32)
    bq32, bk32 = bq.astype(f32), bk.astype(f32)
    m_mat = wq32.T @ wk32                                    # (C, C)
    u_vec = wq32.T @ bk32                                    # (C,)
    w_row = bq32 @ wk32                                      # (C,)
    c0 = jnp.dot(bq32, bk32)                                 # scalar (softmax-invariant)

    khat = jnp.einsum('cd,bdn->bcn', m_mat, x_flat) + u_vec[None, :, None]
    row = (jnp.einsum('d,bdn->bn', w_row, x_flat) + c0)[:, None, :]        # (B, 1, Np) f32
    v = jnp.einsum('cd,bdn->bcn', wv.astype(f32), x_flat) \
        + bv.astype(f32)[None, :, None]

    khat_bf = khat.astype(bf16)                              # (B, C, Np) bf16
    v_bf = v.astype(bf16)                                    # (B, C, Np) bf16
    row_f32 = row.astype(f32)
    gamma1 = jnp.asarray(gamma, dtype=f32).reshape(1)        # (1,) scalar in SMEM

    def per_batch(shape):
        return pl.BlockSpec((pl.Squeezed(),) + shape, lambda b, q: (b, 0, 0))

    in_specs = [
        pl.BlockSpec(memory_space=pltpu.MemorySpace.SMEM),                 # gamma
        pl.BlockSpec((pl.Squeezed(), C, tq), lambda b, q: (b, 0, q)),      # x tile
        per_batch((C, n_pad)),                                             # khat
        per_batch((1, n_pad)),                                             # row
        per_batch((C, n_pad)),                                             # v
    ]
    out_spec_out = pl.BlockSpec((pl.Squeezed(), C, tq), lambda b, q: (b, 0, q))

    if return_attention:
        kernel = functools.partial(_kernel_with_attn, n_actual=N)
        out_shape = (jax.ShapeDtypeStruct((B, C, n_pad), f32),
                     jax.ShapeDtypeStruct((B, n_pad, n_pad), attn_dtype))
        out_specs = [out_spec_out,
                     pl.BlockSpec((pl.Squeezed(), tq, n_pad), lambda b, q: (b, q, 0))]
    else:
        kernel = functools.partial(_kernel_no_attn, n_actual=N)
        out_shape = jax.ShapeDtypeStruct((B, C, n_pad), f32)
        out_specs = out_spec_out

    result = pl.pallas_call(
        kernel,
        out_shape=out_shape,
        grid_spec=pltpu.PrefetchScalarGridSpec(
            num_scalar_prefetch=0,
            grid=(B, nq),
            in_specs=in_specs,
            out_specs=out_specs,
        ),
        compiler_params=pltpu.CompilerParams(
            dimension_semantics=("parallel", "parallel"),
            vmem_limit_bytes=vmem_limit,
        ),
    )(gamma1, x_flat, khat_bf, row_f32, v_bf)

    if return_attention:
        out_flat, attn = result
        if n_pad != N:          # only materialize a sliced copy when padding exists
            attn = attn[:, :N, :N]
    else:
        out_flat, attn = result, None

    if n_pad != N:
        out_flat = out_flat[:, :, :N]
    out = out_flat.reshape(B, C, W, H)
    return out, attn


def _reference(x, wq, bq, wk, bk, wv, bv, gamma):
    B, C, W, H = x.shape
    N = W * H
    xf = x.reshape(B, C, N)
    q = jnp.einsum('oc,bcn->bon', wq, xf) + bq[None, :, None]
    k = jnp.einsum('oc,bcn->bon', wk, xf) + bk[None, :, None]
    v = jnp.einsum('oc,bcn->bon', wv, xf) + bv[None, :, None]
    energy = jnp.einsum('bci,bcj->bij', q, k)
    attn = jax.nn.softmax(energy, axis=-1)
    out = jnp.einsum('bcj,bij->bci', v, attn)
    out = gamma.reshape(()) * out + xf
    return out.reshape(B, C, W, H), attn


if __name__ == "__main__":
    B, C, W, H = 2, 32, 16, 16          # in_dim = 32 -> query/key channels = 4; N = 256
    Cq = C // 8

    key = jax.random.PRNGKey(0)
    kx, kwq, kbq, kwk, kbk, kwv, kbv = jax.random.split(key, 7)

    x = jax.random.normal(kx, (B, C, W, H), dtype=jnp.float32)
    wq = 0.1 * jax.random.normal(kwq, (Cq, C), dtype=jnp.float32)
    bq = 0.1 * jax.random.normal(kbq, (Cq,), dtype=jnp.float32)
    wk = 0.1 * jax.random.normal(kwk, (Cq, C), dtype=jnp.float32)
    bk = 0.1 * jax.random.normal(kbk, (Cq,), dtype=jnp.float32)
    wv = 0.1 * jax.random.normal(kwv, (C, C), dtype=jnp.float32)
    bv = 0.1 * jax.random.normal(kbv, (C,), dtype=jnp.float32)
    # Nonzero gamma so the attention branch of `out` is actually exercised
    # (the module initializes gamma to 0, but semantics are identical).
    gamma = jnp.array([0.5], dtype=jnp.float32)

    out, attn = self_attn_2d(x, wq, bq, wk, bk, wv, bv, gamma)
    jax.block_until_ready((out, attn))

    out_ref, attn_ref = _reference(x, wq, bq, wk, bk, wv, bv, gamma)
    N = W * H
    assert out.shape == (B, C, W, H) and attn.shape == (B, N, N)
    # bf16 MXU operands + approx reciprocal -> looser tolerance than pure f32.
    assert jnp.allclose(attn, attn_ref, atol=2e-2, rtol=2e-2), \
        float(jnp.max(jnp.abs(attn - attn_ref)))
    assert jnp.allclose(out, out_ref, atol=2e-2, rtol=2e-2), \
        float(jnp.max(jnp.abs(out - out_ref)))

    # Variant that skips the (B, N, N) attention-map writeback entirely.
    out2, no_attn = self_attn_2d(x, wq, bq, wk, bk, wv, bv, gamma,
                                 return_attention=False)
    jax.block_until_ready(out2)
    assert no_attn is None
    assert jnp.allclose(out2, out_ref, atol=2e-2, rtol=2e-2)

    print("KERNEL_OK")
</pallas_src>

<mosaic_0001>
module attributes {stable_mosaic.version = 11 : i64} {
  func.func @_kernel_with_attn(%arg0: i32, %arg1: i32, %arg2: memref<1xf32, #tpu.memory_space<smem>>, %arg3: memref<1x32x128xf32, #tpu.memory_space<vmem>>, %arg4: memref<1x32x256xbf16, #tpu.memory_space<vmem>>, %arg5: memref<1x1x256xf32, #tpu.memory_space<vmem>>, %arg6: memref<1x32x256xbf16, #tpu.memory_space<vmem>>, %arg7: memref<1x32x128xf32, #tpu.memory_space<vmem>>, %arg8: memref<1x128x256xf32, #tpu.memory_space<vmem>>) attributes {dimension_semantics = [#tpu.dimension_semantics<parallel>, #tpu.dimension_semantics<parallel>], iteration_bounds = array<i64: 2, 2>, scalar_prefetch = 0 : i64, scratch_operands = 0 : i64, tpu.core_type = #tpu.core_type<tc>, window_params = [{transform_indices = @transform_0, window_bounds = array<i64: 1>}, {transform_indices = @transform_1, window_bounds = array<i64: 1, 32, 128>}, {transform_indices = @transform_2, window_bounds = array<i64: 1, 32, 256>}, {transform_indices = @transform_3, window_bounds = array<i64: 1, 1, 256>}, {transform_indices = @transform_4, window_bounds = array<i64: 1, 32, 256>}, {transform_indices = @transform_5, window_bounds = array<i64: 1, 32, 128>}, {transform_indices = @transform_6, window_bounds = array<i64: 1, 128, 256>}]} {
    %c0 = arith.constant 0 : index
    %c0_0 = arith.constant 0 : index
    %c0_1 = arith.constant 0 : index
    %0 = vector.load %arg3[%c0, %c0_0, %c0_1] : memref<1x32x128xf32, #tpu.memory_space<vmem>>, vector<1x32x128xf32>
    %1 = vector.shape_cast %0 : vector<1x32x128xf32> to vector<32x128xf32>
    %2 = arith.truncf %1 : vector<32x128xf32> to vector<32x128xbf16>
    %c0_2 = arith.constant 0 : index
    %c0_3 = arith.constant 0 : index
    %c0_4 = arith.constant 0 : index
    %3 = vector.load %arg4[%c0_2, %c0_3, %c0_4] : memref<1x32x256xbf16, #tpu.memory_space<vmem>>, vector<1x32x256xbf16>
    %4 = vector.shape_cast %3 : vector<1x32x256xbf16> to vector<32x256xbf16>
    %cst = arith.constant dense<0.000000e+00> : vector<128x256xf32>
    %5 = tpu.matmul %2, %4, %cst {dimension_numbers = #tpu.dot_dimension_numbers<[0], [0], [1], [1], [0, 1, 1, 1], [], []>} : vector<32x128xbf16>, vector<32x256xbf16>, vector<128x256xf32> -> vector<128x256xf32>
    %c0_5 = arith.constant 0 : index
    %c0_6 = arith.constant 0 : index
    %c0_7 = arith.constant 0 : index
    %6 = vector.load %arg5[%c0_5, %c0_6, %c0_7] : memref<1x1x256xf32, #tpu.memory_space<vmem>>, vector<1x1x256xf32>
    %7 = vector.shape_cast %6 : vector<1x1x256xf32> to vector<1x256xf32>
    %8 = vector.broadcast %7 : vector<1x256xf32> to vector<128x256xf32>
    %9 = arith.addf %5, %8 : vector<128x256xf32>
    %cst_8 = arith.constant dense<0xFF800000> : vector<128xf32>
    %10 = vector.multi_reduction <maximumf>, %9, %cst_8 [1] : vector<128x256xf32> to vector<128xf32>
    %11 = vector.shape_cast %10 : vector<128xf32> to vector<128x1xf32>
    %12 = vector.broadcast %11 : vector<128x1xf32> to vector<128x256xf32>
    %13 = arith.subf %9, %12 : vector<128x256xf32>
    %14 = math.exp %13 : vector<128x256xf32>
    %cst_9 = arith.constant dense<0.000000e+00> : vector<128xf32>
    %15 = vector.multi_reduction <add>, %14, %cst_9 [1] : vector<128x256xf32> to vector<128xf32>
    %16 = vector.shape_cast %15 : vector<128xf32> to vector<128x1xf32>
    %17 = tpu.reciprocal %16 {approx = true} : vector<128x1xf32> -> vector<128x1xf32>
    %18 = vector.broadcast %17 : vector<128x1xf32> to vector<128x256xf32>
    %19 = arith.mulf %14, %18 : vector<128x256xf32>
    %c0_10 = arith.constant 0 : index
    %c0_11 = arith.constant 0 : index
    %c0_12 = arith.constant 0 : index
    %20 = vector.load %arg6[%c0_10, %c0_11, %c0_12] : memref<1x32x256xbf16, #tpu.memory_space<vmem>>, vector<1x32x256xbf16>
    %21 = vector.shape_cast %20 : vector<1x32x256xbf16> to vector<32x256xbf16>
    %22 = arith.truncf %19 : vector<128x256xf32> to vector<128x256xbf16>
    %cst_13 = arith.constant dense<0.000000e+00> : vector<32x128xf32>
    %23 = tpu.matmul %21, %22, %cst_13 {dimension_numbers = #tpu.dot_dimension_numbers<[1], [1], [0], [0], [0, 0, 1, 0], [], []>} : vector<32x256xbf16>, vector<128x256xbf16>, vector<32x128xf32> -> vector<32x128xf32>
    %c0_14 = arith.constant 0 : index
    %24 = memref.load %arg2[%c0_14] : memref<1xf32, #tpu.memory_space<smem>>
    %25 = vector.broadcast %24 : f32 to vector<32x128xf32>
    %26 = arith.mulf %25, %23 : vector<32x128xf32>
    %27 = arith.addf %26, %1 : vector<32x128xf32>
    %c0_15 = arith.constant 0 : index
    %c0_16 = arith.constant 0 : index
    %c0_17 = arith.constant 0 : index
    %28 = vector.load %arg7[%c0_15, %c0_16, %c0_17] : memref<1x32x128xf32, #tpu.memory_space<vmem>>, vector<1x32x128xf32>
    %29 = vector.shape_cast %28 : vector<1x32x128xf32> to vector<32x128xf32>
    %30 = vector.shape_cast %27 : vector<32x128xf32> to vector<1x32x128xf32>
    tpu.vector_store %arg7[%c0_15, %c0_16, %c0_17], %30 {strides = array<i32>} : memref<1x32x128xf32, #tpu.memory_space<vmem>>, vector<1x32x128xf32>,
    %c0_18 = arith.constant 0 : index
    %c0_19 = arith.constant 0 : index
    %c0_20 = arith.constant 0 : index
    %31 = vector.load %arg8[%c0_18, %c0_19, %c0_20] : memref<1x128x256xf32, #tpu.memory_space<vmem>>, vector<1x128x256xf32>
    %32 = vector.shape_cast %31 : vector<1x128x256xf32> to vector<128x256xf32>
    %33 = vector.shape_cast %19 : vector<128x256xf32> to vector<1x128x256xf32>
    tpu.vector_store %arg8[%c0_18, %c0_19, %c0_20], %33 {strides = array<i32>} : memref<1x128x256xf32, #tpu.memory_space<vmem>>, vector<1x128x256xf32>,
    return
  }
  func.func @transform_0(%arg0: i32, %arg1: i32) -> i32 {
    %c0_i32 = arith.constant 0 : i32
    %c0_i32_0 = arith.constant 0 : i32
    return %c0_i32 : i32
  }
  func.func @transform_1(%arg0: i32, %arg1: i32) -> (i32, i32, i32) {
    %c0_i32 = arith.constant 0 : i32
    %c0_i32_0 = arith.constant 0 : i32
    return %arg0, %c0_i32, %arg1 : i32, i32, i32
  }
  func.func @transform_2(%arg0: i32, %arg1: i32) -> (i32, i32, i32) {
    %c0_i32 = arith.constant 0 : i32
    %c0_i32_0 = arith.constant 0 : i32
    %c0_i32_1 = arith.constant 0 : i32
    return %arg0, %c0_i32, %c0_i32_0 : i32, i32, i32
  }
  func.func @transform_3(%arg0: i32, %arg1: i32) -> (i32, i32, i32) {
    %c0_i32 = arith.constant 0 : i32
    %c0_i32_0 = arith.constant 0 : i32
    %c0_i32_1 = arith.constant 0 : i32
    return %arg0, %c0_i32, %c0_i32_0 : i32, i32, i32
  }
  func.func @transform_4(%arg0: i32, %arg1: i32) -> (i32, i32, i32) {
    %c0_i32 = arith.constant 0 : i32
    %c0_i32_0 = arith.constant 0 : i32
    %c0_i32_1 = arith.constant 0 : i32
    return %arg0, %c0_i32, %c0_i32_0 : i32, i32, i32
  }
  func.func @transform_5(%arg0: i32, %arg1: i32) -> (i32, i32, i32) {
    %c0_i32 = arith.constant 0 : i32
    %c0_i32_0 = arith.constant 0 : i32
    return %arg0, %c0_i32, %arg1 : i32, i32, i32
  }
  func.func @transform_6(%arg0: i32, %arg1: i32) -> (i32, i32, i32) {
    %c0_i32 = arith.constant 0 : i32
    %c0_i32_0 = arith.constant 0 : i32
    return %arg0, %arg1, %c0_i32 : i32, i32, i32
  }
}

</mosaic_0001>

<llo_original>
// kernel: tpu_custom_call.1
$region0: #{tpu_custom_call.1}
  #allocation0 [shape = 'u32[]', space=smem, size = 0x4, offset = 0x4, fixed_abs, tag = 'smem constant byte address 0x4 - core index']
  #allocation1 [shape = 'u32[72,128]{1,0:T(1,128)}', space=vmem, size = 0x9000, scoped, tag = 'internal scratch']
  #allocation2 [shape = 'f32[1]{0:T(128)S(6)}', space=smem, size = 0x200, scoped, tag = 'scoped memory for tpu_custom_call.1']
  %s0 = inlined_call_operand.<no memory space> [shape: f32[1], index: 0, kind: input, shape index: {}]
  %s1 = inlined_call_operand.hbm [shape: f32[2,32,256], index: 1, kind: input, shape index: {}]
  %s2 = inlined_call_operand.hbm [shape: bf16[2,32,256], index: 2, kind: input, shape index: {}]
  %s3 = inlined_call_operand.hbm [shape: f32[2,1,256], index: 3, kind: input, shape index: {}]
  %s4 = inlined_call_operand.hbm [shape: bf16[2,32,256], index: 4, kind: input, shape index: {}]
  %s5 = inlined_call_operand.hbm [shape: f32[2,32,256], index: 5, kind: output, shape index: {0}]
  %s6 = inlined_call_operand.hbm [shape: f32[2,256,256], index: 6, kind: output, shape index: {1}]
  %7 = xla_tuple %s5, %s6
  %s8 = sld [smem:[#allocation0]]
  $region77: #{tpu_custom_call.1} parent=0
    _
  %s10 = ssub.s32 1, %s8
  %s11 = scalar_select 0, %s10, %s8
  %12 = sst [smem:[#allocation2]] %s0
  $region1: #{tpu_custom_call.1} parent=0
    #allocation3 [shape = 'u8[32768]{0}', space=vmem, size = 0x8000, scoped, tag = 'input window, operand 1']
    #allocation4 [shape = 's32[2]{0}', space=sflag, size = 0x8, scoped, tag = 'scoped memory for tpu_custom_call.1']
    #allocation5 [shape = 's32[2]{0}', space=sflag, size = 0x8, scoped, tag = 'scoped memory for tpu_custom_call.1']
    #allocation6 [shape = 'u8[32768]{0}', space=vmem, size = 0x8000, scoped, tag = 'input window, operand 2']
    #allocation7 [shape = 's32[2]{0}', space=sflag, size = 0x8, scoped, tag = 'scoped memory for tpu_custom_call.1']
    #allocation8 [shape = 'u8[2048]{0}', space=vmem, size = 0x800, scoped, tag = 'input window, operand 3']
    #allocation9 [shape = 'u8[32768]{0}', space=vmem, size = 0x8000, scoped, tag = 'input window, operand 4']
    #allocation10 [shape = 's32[2]{0}', space=sflag, size = 0x8, scoped, tag = 'scoped memory for tpu_custom_call.1']
    #allocation11 [shape = 'u8[32768]{0}', space=vmem, size = 0x8000, scoped, tag = 'output window, operand 0']
    #allocation12 [shape = 'u8[262144]{0}', space=vmem, size = 0x40000, scoped, tag = 'output window, operand 1']
    #allocation13 [shape = 's32[2]{0}', space=sflag, size = 0x8, scoped, tag = 'scoped memory for tpu_custom_call.1']
    %13 = vsyncpa [#allocation4], 0
    %s14 = scalar_lea.sflag [#allocation4], 1
    %15 = vsyncpa %s14, 0
    %16 = vsyncpa [#allocation7], 0
    %s17 = scalar_lea.sflag [#allocation7], 1
    %18 = vsyncpa %s17, 0
    %19 = vsyncpa [#allocation10], 0
    %s20 = scalar_lea.sflag [#allocation10], 1
    %21 = vsyncpa %s20, 0
    %22 = vsyncpa [#allocation5], 0
    %s23 = scalar_lea.sflag [#allocation5], 1
    %24 = vsyncpa %s23, 0
    %25 = vsyncpa [#allocation13], 0
    %s26 = scalar_lea.sflag [#allocation13], 1
    %27 = vsyncpa %s26, 0
    loop: start=0, step=1, limit=6
    $region2: #{tpu_custom_call.1} parent=1 // loop_pre_header
      _
    $region3: #{tpu_custom_call.1} parent=1 // loop_header
      %s29 = sphi 0, %s33
      %p30 = scmp.ge.s32.totalorder %s29, 6
      %s36 = sphi 0, %s48
      %s37 = sphi 0, %s44
      %s38 = sphi 0, %s36
      %s39 = sphi 0, %s37
      %s40 = sphi 0, %s38
      %s41 = sphi 0, %s39
      %s49 = sphi 0, %s49
      %s51 = sphi 0, %s49
      %s52 = sphi 0, %s51
      %s66 = sphi 0, %s52
      %s74 = sphi 0, %s76
      %s77 = sphi 0, %s74
      %s78 = sphi 0, %s77
      %s94 = sphi 0, %s78
      %s100 = sphi 0, %s102
      %s103 = sphi 0, %s100
      %s104 = sphi 0, %s103
      %s120 = sphi 0, %s104
      %s126 = sphi 0, %s128
      %s129 = sphi 0, %s126
      %s130 = sphi 0, %s129
      %s146 = sphi 0, %s130
      %s152 = sphi 0, %s154
      %s155 = sphi 0, %s152
      %s156 = sphi 0, %s155
      %s172 = sphi 0, %s156
      %s180 = sphi 0, %s182
      %s183 = sphi 0, %s180
      %s184 = sphi 0, %s183
      %s200 = sphi 0, %s184
      %s208 = sphi 0, %s210
      %s211 = sphi 0, %s208
      %s212 = sphi 0, %s211
      %s228 = sphi 0, %s212
    $region4: #{tpu_custom_call.1} parent=1 // loop_header_branch
      %32 = sbr.rel (%p30) target = $region8
    $region5: #{tpu_custom_call.1} parent=1 // loop_body
      %s34 = ssub.s32 %s29, 1
      %s35 = ssub.s32 %s29, 2
      %s42 = sadd.s32 1, %s37
      %p43 = scmp.ge.s32.totalorder %s42, 2
      %s44 = scalar_select %p43, 0, %s42
      %s45 = sadd.s32 1, %s36
      %s46 = scalar_select %p43, %s45, %s36
      %p47 = scmp.ge.s32.totalorder %s46, 2
      %s48 = scalar_select %p47, 0, %s46
      %s50 = sadd.s32 %s49, 1
      %p53 = scmp.eq.s32.totalorder %s29, 3
      %p54 = scmp.ne.s32.totalorder %s49, %s51
      %p55 = scmp.eq.s32.totalorder %s29, 0
      %p56 = por %p54, %p55
      %p57 = scmp.ne.s32.totalorder %s49, %s51
      %p58 = scmp.eq.s32.totalorder %s34, 3
      %p59 = por %p57, %p58
      %p60 = scmp.ne.s32.totalorder %s51, %s52
      %p61 = scmp.eq.s32.totalorder %s34, 0
      %p62 = por %p60, %p61
      %p63 = scmp.ne.s32.totalorder %s51, %s52
      %p64 = scmp.eq.s32.totalorder %s35, 3
      %p65 = por %p63, %p64
      %p67 = scmp.ne.s32.totalorder %s52, %s66
      %p68 = scmp.eq.s32.totalorder %s35, 0
      %p69 = por %p67, %p68
      %s70 = ssub.s32 %s36, %s48
      %s71 = ssub.s32 %s37, %s44
      %s72 = sor.u32 %s70, %s71
      %p73 = scmp.eq.s32.totalorder %s72, 0
      %s75 = sadd.s32 %s74, 1
      %s76 = scalar_select %p73, %s74, %s75
      %p79 = pneg %p73
      %p80 = scmp.eq.s32.totalorder %s29, 3
      %p81 = por %p79, %p80
      %p82 = scmp.ne.s32.totalorder %s74, %s77
      %p83 = scmp.eq.s32.totalorder %s29, 0
      %p84 = por %p82, %p83
      %p85 = scmp.ne.s32.totalorder %s74, %s77
      %p86 = scmp.eq.s32.totalorder %s34, 3
      %p87 = por %p85, %p86
      %p88 = scmp.ne.s32.totalorder %s77, %s78
      %p89 = scmp.eq.s32.totalorder %s34, 0
      %p90 = por %p88, %p89
      %p91 = scmp.ne.s32.totalorder %s77, %s78
      %p92 = scmp.eq.s32.totalorder %s35, 3
      %p93 = por %p91, %p92
      %p95 = scmp.ne.s32.totalorder %s78, %s94
      %p96 = scmp.eq.s32.totalorder %s35, 0
      %p97 = por %p95, %p96
      %s98 = ssub.s32 %s36, %s48
      %p99 = scmp.eq.s32.totalorder %s98, 0
      %s101 = sadd.s32 %s100, 1
      %s102 = scalar_select %p99, %s100, %s101
      %p105 = pneg %p99
      %p106 = scmp.eq.s32.totalorder %s29, 3
      %p107 = por %p105, %p106
      %p108 = scmp.ne.s32.totalorder %s100, %s103
      %p109 = scmp.eq.s32.totalorder %s29, 0
      %p110 = por %p108, %p109
      %p111 = scmp.ne.s32.totalorder %s100, %s103
      %p112 = scmp.eq.s32.totalorder %s34, 3
      %p113 = por %p111, %p112
      %p114 = scmp.ne.s32.totalorder %s103, %s104
      %p115 = scmp.eq.s32.totalorder %s34, 0
      %p116 = por %p114, %p115
      %p117 = scmp.ne.s32.totalorder %s103, %s104
      %p118 = scmp.eq.s32.totalorder %s35, 3
      %p119 = por %p117, %p118
      %p121 = scmp.ne.s32.totalorder %s104, %s120
      %p122 = scmp.eq.s32.totalorder %s35, 0
      %p123 = por %p121, %p122
      %s124 = ssub.s32 %s36, %s48
      %p125 = scmp.eq.s32.totalorder %s124, 0
      %s127 = sadd.s32 %s126, 1
      %s128 = scalar_select %p125, %s126, %s127
      %p131 = pneg %p125
      %p132 = scmp.eq.s32.totalorder %s29, 3
      %p133 = por %p131, %p132
      %p134 = scmp.ne.s32.totalorder %s126, %s129
      %p135 = scmp.eq.s32.totalorder %s29, 0
      %p136 = por %p134, %p135
      %p137 = scmp.ne.s32.totalorder %s126, %s129
      %p138 = scmp.eq.s32.totalorder %s34, 3
      %p139 = por %p137, %p138
      %p140 = scmp.ne.s32.totalorder %s129, %s130
      %p141 = scmp.eq.s32.totalorder %s34, 0
      %p142 = por %p140, %p141
      %p143 = scmp.ne.s32.totalorder %s129, %s130
      %p144 = scmp.eq.s32.totalorder %s35, 3
      %p145 = por %p143, %p144
      %p147 = scmp.ne.s32.totalorder %s130, %s146
      %p148 = scmp.eq.s32.totalorder %s35, 0
      %p149 = por %p147, %p148
      %s150 = ssub.s32 %s36, %s48
      %p151 = scmp.eq.s32.totalorder %s150, 0
      %s153 = sadd.s32 %s152, 1
      %s154 = scalar_select %p151, %s152, %s153
      %p157 = pneg %p151
      %p158 = scmp.eq.s32.totalorder %s29, 3
      %p159 = por %p157, %p158
      %p160 = scmp.ne.s32.totalorder %s152, %s155
      %p161 = scmp.eq.s32.totalorder %s29, 0
      %p162 = por %p160, %p161
      %p163 = scmp.ne.s32.totalorder %s152, %s155
      %p164 = scmp.eq.s32.totalorder %s34, 3
      %p165 = por %p163, %p164
      %p166 = scmp.ne.s32.totalorder %s155, %s156
      %p167 = scmp.eq.s32.totalorder %s34, 0
      %p168 = por %p166, %p167
      %p169 = scmp.ne.s32.totalorder %s155, %s156
      %p170 = scmp.eq.s32.totalorder %s35, 3
      %p171 = por %p169, %p170
      %p173 = scmp.ne.s32.totalorder %s156, %s172
      %p174 = scmp.eq.s32.totalorder %s35, 0
      %p175 = por %p173, %p174
      %s176 = ssub.s32 %s36, %s48
      %s177 = ssub.s32 %s37, %s44
      %s178 = sor.u32 %s176, %s177
      %p179 = scmp.eq.s32.totalorder %s178, 0
      %s181 = sadd.s32 %s180, 1
      %s182 = scalar_select %p179, %s180, %s181
      %p185 = pneg %p179
      %p186 = scmp.eq.s32.totalorder %s29, 3
      %p187 = por %p185, %p186
      %p188 = scmp.ne.s32.totalorder %s180, %s183
      %p189 = scmp.eq.s32.totalorder %s29, 0
      %p190 = por %p188, %p189
      %p191 = scmp.ne.s32.totalorder %s180, %s183
      %p192 = scmp.eq.s32.totalorder %s34, 3
      %p193 = por %p191, %p192
      %p194 = scmp.ne.s32.totalorder %s183, %s184
      %p195 = scmp.eq.s32.totalorder %s34, 0
      %p196 = por %p194, %p195
      %p197 = scmp.ne.s32.totalorder %s183, %s184
      %p198 = scmp.eq.s32.totalorder %s35, 3
      %p199 = por %p197, %p198
      %p201 = scmp.ne.s32.totalorder %s184, %s200
      %p202 = scmp.eq.s32.totalorder %s35, 0
      %p203 = por %p201, %p202
      %s204 = ssub.s32 %s36, %s48
      %s205 = ssub.s32 %s37, %s44
      %s206 = sor.u32 %s204, %s205
      %p207 = scmp.eq.s32.totalorder %s206, 0
      %s209 = sadd.s32 %s208, 1
      %s210 = scalar_select %p207, %s208, %s209
      %p213 = pneg %p207
      %p214 = scmp.eq.s32.totalorder %s29, 3
      %p215 = por %p213, %p214
      %p216 = scmp.ne.s32.totalorder %s208, %s211
      %p217 = scmp.eq.s32.totalorder %s29, 0
      %p218 = por %p216, %p217
      %p219 = scmp.ne.s32.totalorder %s208, %s211
      %p220 = scmp.eq.s32.totalorder %s34, 3
      %p221 = por %p219, %p220
      %p222 = scmp.ne.s32.totalorder %s211, %s212
      %p223 = scmp.eq.s32.totalorder %s34, 0
      %p224 = por %p222, %p223
      %p225 = scmp.ne.s32.totalorder %s211, %s212
      %p226 = scmp.eq.s32.totalorder %s35, 3
      %p227 = por %p225, %p226
      %p229 = scmp.ne.s32.totalorder %s212, %s228
      %p230 = scmp.eq.s32.totalorder %s35, 0
      %p231 = por %p229, %p230
      %p232 = scmp.le.s32.totalorder 1, %s29
      %p233 = scmp.lt.s32.totalorder %s29, 5
      %p234 = pnand %p232, %p233
      %p235 = pneg %p234
      // Predicated region
      $region9: #{tpu_custom_call.1} parent=5 // pred_check
        _
      $region10: #{tpu_custom_call.1} parent=5 // pred_check_branch
        %237 = sbr.rel (%p234) target = $region12
      $region11: #{tpu_custom_call.1} parent=5 // pred_region
        %s238 = ssub.s32 %s29, 1
        // Predicated region
        $region13: #{tpu_custom_call.1} parent=11 // pred_check
          %p239 = pneg %p62
        $region14: #{tpu_custom_call.1} parent=11 // pred_check_branch
          %241 = sbr.rel (%p239) target = $region16
        $region15: #{tpu_custom_call.1} parent=11 // pred_region
          _
        $region16: #{tpu_custom_call.1} parent=11 // pred_fallthru
          _
      $region12: #{tpu_custom_call.1} parent=5 // pred_fallthru
        _
      %p242 = scmp.lt.s32.totalorder %s29, 4
      // Predicated region
      $region17: #{tpu_custom_call.1} parent=5 // pred_check
        %p243 = pneg %p242
      $region18: #{tpu_custom_call.1} parent=5 // pred_check_branch
        %245 = sbr.rel (%p243) target = $region20
      $region19: #{tpu_custom_call.1} parent=5 // pred_region
        // Predicated region
        $region21: #{tpu_custom_call.1} parent=19 // pred_check
          %p246 = pneg %p84
        $region22: #{tpu_custom_call.1} parent=19 // pred_check_branch
          %248 = sbr.rel (%p246) target = $region24
        $region23: #{tpu_custom_call.1} parent=19 // pred_region
          %s249 = sand.u32 %s74, 1
          %s250 = scalar_lea.sflag [#allocation4], %s249
          %s251 = sand.u32 %s74, 1
          %s252 = smul.addr %s251, 32
          %s253 = scalar_lea.vmem [#allocation3], %s252
          %255 = vsyncadd %s250, 0
          %s256 = smul.addr %s36, 8
          %s257 = sadd.s32 %s37, %s256
          %s258 = smul.addr %s257, 8
          %s259 = scalar_lea.hbm %s1, %s258
          %s260 = sshll.u32 %s259, 4
          %s261 = int_to_ptr.hbm [resolvable:$true] %s260
          %s262 = sshll.u32 %s253, 4
          %s263 = int_to_ptr.vmem [resolvable:$true] %s262
          %268 = dma.hbm_to_vmem [thread:$0]  %s261, 512, %s263, %s250, 256, 128, 8
        $region24: #{tpu_custom_call.1} parent=19 // pred_fallthru
          _
        // Predicated region
        $region25: #{tpu_custom_call.1} parent=19 // pred_check
          %p269 = pneg %p110
        $region26: #{tpu_custom_call.1} parent=19 // pred_check_branch
          %271 = sbr.rel (%p269) target = $region28
        $region27: #{tpu_custom_call.1} parent=19 // pred_region
          %s272 = sand.u32 %s29, 1
          %s273 = scalar_lea.sflag [#allocation7], %s272
          %s274 = sand.u32 %s100, 1
          %s275 = smul.addr %s274, 32
          %s276 = scalar_lea.vmem [#allocation6], %s275
          %278 = vsyncadd %s273, 0
          %s279 = smul.addr %s36, 8
          %s280 = smul.addr %s279, 4
          %s281 = scalar_lea.hbm %s2, %s280
          %s282 = sshll.u32 %s281, 4
          %s283 = int_to_ptr.hbm [resolvable:$true] %s282
          %s284 = sshll.u32 %s276, 4
          %s285 = int_to_ptr.vmem [resolvable:$true] %s284
          %290 = dma.hbm_to_vmem [thread:$0]  %s283, 512, %s285, %s273, 128, 128, 8
        $region28: #{tpu_custom_call.1} parent=19 // pred_fallthru
          _
        // Predicated region
        $region29: #{tpu_custom_call.1} parent=19 // pred_check
          %p291 = pneg %p136
        $region30: #{tpu_custom_call.1} parent=19 // pred_check_branch
          %293 = sbr.rel (%p291) target = $region32
        $region31: #{tpu_custom_call.1} parent=19 // pred_region
          %s294 = sand.u32 %s29, 1
          %s295 = scalar_lea.sflag [#allocation7], %s294
          %s296 = sand.u32 %s126, 1
          %s297 = smul.addr %s296, 2
          %s298 = scalar_lea.vmem [#allocation8], %s297
          %300 = vsyncadd %s295, 0
          %s301 = smul.addr %s36, 2
          %s302 = scalar_lea.hbm %s3, %s301
          %s304 = sshll.u32 %s302, 4
          %s305 = int_to_ptr.hbm [resolvable:$true] %s304
          %s306 = sshll.u32 %s298, 4
          %s307 = int_to_ptr.vmem [resolvable:$true] %s306
          %309 = dma.hbm_to_vmem [thread:$0]  %s305, 32, %s307, %s295
        $region32: #{tpu_custom_call.1} parent=19 // pred_fallthru
          _
        // Predicated region
        $region33: #{tpu_custom_call.1} parent=19 // pred_check
          %p310 = pneg %p162
        $region34: #{tpu_custom_call.1} parent=19 // pred_check_branch
          %312 = sbr.rel (%p310) target = $region36
        $region35: #{tpu_custom_call.1} parent=19 // pred_region
          %s313 = sand.u32 %s152, 1
          %s314 = scalar_lea.sflag [#allocation10], %s313
          %s315 = sand.u32 %s152, 1
          %s316 = smul.addr %s315, 32
          %s317 = scalar_lea.vmem [#allocation9], %s316
          %319 = vsyncadd %s314, 0
          %s320 = smul.addr %s36, 8
          %s321 = smul.addr %s320, 4
          %s322 = scalar_lea.hbm %s4, %s321
          %s323 = sshll.u32 %s322, 4
          %s324 = int_to_ptr.hbm [resolvable:$true] %s323
          %s325 = sshll.u32 %s317, 4
          %s326 = int_to_ptr.vmem [resolvable:$true] %s325
          %331 = dma.hbm_to_vmem [thread:$0]  %s324, 512, %s326, %s314, 128, 128, 8
        $region36: #{tpu_custom_call.1} parent=19 // pred_fallthru
          _
      $region20: #{tpu_custom_call.1} parent=5 // pred_fallthru
        _
      %p332 = scmp.le.s32.totalorder 1, %s29
      %p333 = scmp.lt.s32.totalorder %s29, 5
      %p334 = pnand %p332, %p333
      %p335 = pneg %p334
      // Predicated region
      $region37: #{tpu_custom_call.1} parent=5 // pred_check
        _
      $region38: #{tpu_custom_call.1} parent=5 // pred_check_branch
        %337 = sbr.rel (%p334) target = $region40
      $region39: #{tpu_custom_call.1} parent=5 // pred_region
        %s338 = ssub.s32 %s29, 1
        %s339 = sand.u32 %s77, 1
        %s340 = scalar_lea.sflag [#allocation4], %s339
        %s341 = sand.u32 %s77, 1
        %s342 = smul.addr %s341, 32
        %s343 = scalar_lea.vmem [#allocation3], %s342
        // Predicated region
        $region41: #{tpu_custom_call.1} parent=39 // pred_check
          %p344 = pneg %p90
        $region42: #{tpu_custom_call.1} parent=39 // pred_check_branch
          %346 = sbr.rel (%p344) target = $region44
        $region43: #{tpu_custom_call.1} parent=39 // pred_region
          %348 = dma.done %s340, 512
        $region44: #{tpu_custom_call.1} parent=39 // pred_fallthru
          _
        %s349 = sand.u32 %s34, 1
        %s350 = scalar_lea.sflag [#allocation7], %s349
        %s351 = sand.u32 %s103, 1
        %s352 = smul.addr %s351, 32
        %s353 = scalar_lea.vmem [#allocation6], %s352
        // Predicated region
        $region45: #{tpu_custom_call.1} parent=39 // pred_check
          %p354 = pneg %p116
        $region46: #{tpu_custom_call.1} parent=39 // pred_check_branch
          %356 = sbr.rel (%p354) target = $region48
        $region47: #{tpu_custom_call.1} parent=39 // pred_region
          %358 = dma.done %s350, 512
        $region48: #{tpu_custom_call.1} parent=39 // pred_fallthru
          _
        %s359 = sand.u32 %s34, 1
        %s360 = scalar_lea.sflag [#allocation7], %s359
        %s361 = sand.u32 %s129, 1
        %s362 = smul.addr %s361, 2
        %s363 = scalar_lea.vmem [#allocation8], %s362
        // Predicated region
        $region49: #{tpu_custom_call.1} parent=39 // pred_check
          %p364 = pneg %p142
        $region50: #{tpu_custom_call.1} parent=39 // pred_check_branch
          %366 = sbr.rel (%p364) target = $region52
        $region51: #{tpu_custom_call.1} parent=39 // pred_region
          %368 = dma.done %s360, 32
        $region52: #{tpu_custom_call.1} parent=39 // pred_fallthru
          _
        %s369 = sand.u32 %s155, 1
        %s370 = scalar_lea.sflag [#allocation10], %s369
        %s371 = sand.u32 %s155, 1
        %s372 = smul.addr %s371, 32
        %s373 = scalar_lea.vmem [#allocation9], %s372
        // Predicated region
        $region53: #{tpu_custom_call.1} parent=39 // pred_check
          %p374 = pneg %p168
        $region54: #{tpu_custom_call.1} parent=39 // pred_check_branch
          %376 = sbr.rel (%p374) target = $region56
        $region55: #{tpu_custom_call.1} parent=39 // pred_region
          %378 = dma.done %s370, 512
        $region56: #{tpu_custom_call.1} parent=39 // pred_fallthru
          _
        %p379 = pneg %p62
        %p380 = pneg %p59
        %s381 = sand.u32 %s77, 1
        %s382 = scalar_lea.sflag [#allocation4], %s381
        %s383 = sand.u32 %s77, 1
        %s384 = smul.addr %s383, 32
        %s385 = scalar_lea.vmem [#allocation3], %s384
        %p386 = pneg %p90
        %p387 = pneg %p87
        %s388 = sand.u32 %s34, 1
        %s389 = scalar_lea.sflag [#allocation7], %s388
        %s390 = sand.u32 %s103, 1
        %s391 = smul.addr %s390, 32
        %s392 = scalar_lea.vmem [#allocation6], %s391
        %p393 = pneg %p116
        %p394 = pneg %p113
        %s395 = sand.u32 %s34, 1
        %s396 = scalar_lea.sflag [#allocation7], %s395
        %s397 = sand.u32 %s129, 1
        %s398 = smul.addr %s397, 2
        %s399 = scalar_lea.vmem [#allocation8], %s398
        %p400 = pneg %p142
        %p401 = pneg %p139
        %s402 = sand.u32 %s155, 1
        %s403 = scalar_lea.sflag [#allocation10], %s402
        %s404 = sand.u32 %s155, 1
        %s405 = smul.addr %s404, 32
        %s406 = scalar_lea.vmem [#allocation9], %s405
        %p407 = pneg %p168
        %p408 = pneg %p165
        %p409 = pneg %p196
        %p410 = pneg %p193
        %s411 = sand.u32 %s183, 1
        %s412 = scalar_lea.sflag [#allocation5], %s411
        %s413 = sand.u32 %s183, 1
        %s414 = smul.addr %s413, 32
        %s415 = scalar_lea.vmem [#allocation11], %s414
        %p416 = pneg %p224
        %p417 = pneg %p221
        %s418 = sand.u32 %s211, 1
        %s419 = scalar_lea.sflag [#allocation13], %s418
        %s420 = sand.u32 %s211, 1
        %s421 = smul.addr %s420, 256
        %s422 = scalar_lea.vmem [#allocation12], %s421
        %s423 = smul.u32 16, %s39
        %v425 = vld [vmem:[%s343] sm:$0xff]
        %v426 = vld [vmem:[%s343 + $0x8] sm:$0xff]
        %v427 = vld [vmem:[%s343 + $0x10] sm:$0xff]
        %v428 = vld [vmem:[%s343 + $0x18] sm:$0xff]
        %v429 = vpack.c.bf16 %v426, %v425
        %v430 = vpack.c.bf16 %v428, %v427
        %v431 = vld [vmem:[%s353] sm:$0xff]
        %v432 = vld [vmem:[%s353 + $0x8] sm:$0xff]
        %v433 = vld [vmem:[%s353 + $0x10] sm:$0xff]
        %v434 = vld [vmem:[%s353 + $0x18] sm:$0xff]
        %v435 = vld [vmem:[%s363] sm:$0x3]
        %v437 = vperm.slane %v435, 0
        %v438 = vperm.slane %v435, 1
        %441 = vxpose.xlu0.c.b16.start [1/8] %v429, 128
        %442 = vxpose.xlu0.c.b16.cont [2/8] %v430, 128
        %443 = vxpose.xlu0.c.b16.cont [3/8] 0, 128
        %444 = vxpose.xlu0.c.b16.cont [4/8] 0, 128
        %445 = vxpose.xlu0.c.b16.cont [5/8] 0, 128
        %446 = vxpose.xlu0.c.b16.cont [6/8] 0, 128
        %447 = vxpose.xlu0.c.b16.cont [7/8] 0, 128
        %448 = vxpose.xlu0.c.b16.end [8/8] 0, 128
        %v449 = vpop.trf.xlu0
        %v450 = vpop.trf.xlu0
        %v451 = vpop.trf.xlu0
        %v452 = vpop.trf.xlu0
        %v453 = vpop.trf.xlu0
        %v454 = vpop.trf.xlu0
        %v455 = vpop.trf.xlu0
        %v456 = vpop.trf.xlu0
        %v461 = vunpack.c.l.b16 %v431
        %v462 = vunpack.c.h.b16 %v431
        %v463 = vunpack.c.l.b16 %v432
        %v464 = vunpack.c.h.b16 %v432
        %v465 = vunpack.c.l.b16 %v433
        %v466 = vunpack.c.h.b16 %v433
        %v467 = vunpack.c.l.b16 %v434
        %v468 = vunpack.c.h.b16 %v434
        %v469 = vpack.c.b16 %v463, %v461
        %v470 = vpack.c.b16 %v464, %v462
        %v471 = vpack.c.b16 %v467, %v465
        %v472 = vpack.c.b16 %v468, %v466
        %vm477 = vcmask 261120
        %v479 = vsel %vm477, %v449, 0
        %v482 = vsel %vm477, %v450, 0
        %v485 = vsel %vm477, %v451, 0
        %v488 = vsel %vm477, %v452, 0
        %v491 = vsel %vm477, %v453, 0
        %v494 = vsel %vm477, %v454, 0
        %v497 = vsel %vm477, %v455, 0
        %v500 = vsel %vm477, %v456, 0
        %502 = vmatpush.bf16.msra.mxu0 0
        %503 = vmatpush.bf16.msra.mxu0 0
        %504 = vmatpush.bf16.msra.mxu0 0
        %505 = vmatpush.bf16.msra.mxu0 0
        %506 = vmatpush.bf16.msra.mxu0 0
        %507 = vmatpush.bf16.msra.mxu0 0
        %508 = vmatpush.bf16.msra.mxu0 %v471
        %509 = vmatpush.bf16.msra.mxu0 %v469
        %510 = vmatmul.bf16.gmra.mxu0 %v479
        %v511 = vpop.f32.mrf.mxu0
        %v512 = vadd.f32 %v437, %v511
        %v513 = vpop.f32.mrf.mxu0
        %v514 = vadd.f32 %v437, %v513
        %515 = vmatmul.bf16.gmra.mxu0 %v482
        %v516 = vpop.f32.mrf.mxu0
        %v517 = vadd.f32 %v437, %v516
        %v518 = vpop.f32.mrf.mxu0
        %v519 = vadd.f32 %v437, %v518
        %520 = vmatmul.bf16.gmra.mxu0 %v485
        %v521 = vpop.f32.mrf.mxu0
        %v522 = vadd.f32 %v437, %v521
        %v523 = vpop.f32.mrf.mxu0
        %v524 = vadd.f32 %v437, %v523
        %525 = vmatmul.bf16.gmra.mxu0 %v488
        %v526 = vpop.f32.mrf.mxu0
        %v527 = vadd.f32 %v437, %v526
        %v528 = vpop.f32.mrf.mxu0
        %v529 = vadd.f32 %v437, %v528
        %530 = vmatmul.bf16.gmra.mxu0 %v491
        %v531 = vpop.f32.mrf.mxu0
        %v532 = vadd.f32 %v437, %v531
        %v533 = vpop.f32.mrf.mxu0
        %v534 = vadd.f32 %v437, %v533
        %535 = vmatmul.bf16.gmra.mxu0 %v494
        %v536 = vpop.f32.mrf.mxu0
        %v537 = vadd.f32 %v437, %v536
        %v538 = vpop.f32.mrf.mxu0
        %v539 = vadd.f32 %v437, %v538
        %540 = vmatmul.bf16.gmra.mxu0 %v497
        %v541 = vpop.f32.mrf.mxu0
        %v542 = vadd.f32 %v437, %v541
        %v543 = vpop.f32.mrf.mxu0
        %v544 = vadd.f32 %v437, %v543
        %545 = vmatmul.bf16.gmra.mxu0 %v500
        %v546 = vpop.f32.mrf.mxu0
        %v547 = vadd.f32 %v437, %v546
        %v548 = vpop.f32.mrf.mxu0
        %v549 = vadd.f32 %v437, %v548
        %550 = vdwg.mxu0
        %551 = vmatpush.bf16.msra.mxu0 0
        %552 = vmatpush.bf16.msra.mxu0 0
        %553 = vmatpush.bf16.msra.mxu0 0
        %554 = vmatpush.bf16.msra.mxu0 0
        %555 = vmatpush.bf16.msra.mxu0 0
        %556 = vmatpush.bf16.msra.mxu0 0
        %557 = vmatpush.bf16.msra.mxu0 %v472
        %558 = vmatpush.bf16.msra.mxu0 %v470
        %559 = vmatmul.bf16.gmra.mxu0 %v479
        %v560 = vpop.f32.mrf.mxu0
        %v561 = vadd.f32 %v438, %v560
        %v562 = vpop.f32.mrf.mxu0
        %v563 = vadd.f32 %v438, %v562
        %564 = vmatmul.bf16.gmra.mxu0 %v482
        %v565 = vpop.f32.mrf.mxu0
        %v566 = vadd.f32 %v438, %v565
        %v567 = vpop.f32.mrf.mxu0
        %v568 = vadd.f32 %v438, %v567
        %569 = vmatmul.bf16.gmra.mxu0 %v485
        %v570 = vpop.f32.mrf.mxu0
        %v571 = vadd.f32 %v438, %v570
        %v572 = vpop.f32.mrf.mxu0
        %v573 = vadd.f32 %v438, %v572
        %574 = vmatmul.bf16.gmra.mxu0 %v488
        %v575 = vpop.f32.mrf.mxu0
        %v576 = vadd.f32 %v438, %v575
        %v577 = vpop.f32.mrf.mxu0
        %v578 = vadd.f32 %v438, %v577
        %579 = vmatmul.bf16.gmra.mxu0 %v491
        %v580 = vpop.f32.mrf.mxu0
        %v581 = vadd.f32 %v438, %v580
        %v582 = vpop.f32.mrf.mxu0
        %v583 = vadd.f32 %v438, %v582
        %584 = vmatmul.bf16.gmra.mxu0 %v494
        %v585 = vpop.f32.mrf.mxu0
        %v586 = vadd.f32 %v438, %v585
        %v587 = vpop.f32.mrf.mxu0
        %v588 = vadd.f32 %v438, %v587
        %589 = vmatmul.bf16.gmra.mxu0 %v497
        %v590 = vpop.f32.mrf.mxu0
        %v591 = vadd.f32 %v438, %v590
        %v592 = vpop.f32.mrf.mxu0
        %v593 = vadd.f32 %v438, %v592
        %594 = vmatmul.bf16.gmra.mxu0 %v500
        %v595 = vpop.f32.mrf.mxu0
        %v596 = vadd.f32 %v438, %v595
        %v597 = vpop.f32.mrf.mxu0
        %v598 = vadd.f32 %v438, %v597
        %599 = vdwg.mxu0
        %v600 = vmax.f32 %v512, %v561
        %601 = vmax.xlane.f32.xlu0 %v600
        %v602 = vpop.xlane.xlu0 %601
        %v603 = vmax.f32 %v514, %v563
        %604 = vmax.xlane.f32.xlu0 %v603
        %v605 = vpop.xlane.xlu0 %604
        %v606 = vmax.f32 %v517, %v566
        %607 = vmax.xlane.f32.xlu0 %v606
        %v608 = vpop.xlane.xlu0 %607
        %v609 = vmax.f32 %v519, %v568
        %610 = vmax.xlane.f32.xlu0 %v609
        %v611 = vpop.xlane.xlu0 %610
        %v612 = vmax.f32 %v522, %v571
        %613 = vmax.xlane.f32.xlu0 %v612
        %v614 = vpop.xlane.xlu0 %613
        %v615 = vmax.f32 %v524, %v573
        %616 = vmax.xlane.f32.xlu0 %v615
        %v617 = vpop.xlane.xlu0 %616
        %v618 = vmax.f32 %v527, %v576
        %619 = vmax.xlane.f32.xlu0 %v618
        %v620 = vpop.xlane.xlu0 %619
        %v621 = vmax.f32 %v529, %v578
        %622 = vmax.xlane.f32.xlu0 %v621
        %v623 = vpop.xlane.xlu0 %622
        %v624 = vmax.f32 %v532, %v581
        %625 = vmax.xlane.f32.xlu0 %v624
        %v626 = vpop.xlane.xlu0 %625
        %v627 = vmax.f32 %v534, %v583
        %628 = vmax.xlane.f32.xlu0 %v627
        %v629 = vpop.xlane.xlu0 %628
        %v630 = vmax.f32 %v537, %v586
        %631 = vmax.xlane.f32.xlu0 %v630
        %v632 = vpop.xlane.xlu0 %631
        %v633 = vmax.f32 %v539, %v588
        %634 = vmax.xlane.f32.xlu0 %v633
        %v635 = vpop.xlane.xlu0 %634
        %v636 = vmax.f32 %v542, %v591
        %637 = vmax.xlane.f32.xlu0 %v636
        %v638 = vpop.xlane.xlu0 %637
        %v639 = vmax.f32 %v544, %v593
        %640 = vmax.xlane.f32.xlu0 %v639
        %v641 = vpop.xlane.xlu0 %640
        %v642 = vmax.f32 %v547, %v596
        %643 = vmax.xlane.f32.xlu0 %v642
        %v644 = vpop.xlane.xlu0 %643
        %v645 = vmax.f32 %v549, %v598
        %646 = vmax.xlane.f32.xlu0 %v645
        %v647 = vpop.xlane.xlu0 %646
        %v648 = vsub.f32 %v512, %v602
        %v649 = vsub.f32 %v561, %v602
        %v650 = vsub.f32 %v514, %v605
        %v651 = vsub.f32 %v563, %v605
        %v652 = vsub.f32 %v517, %v608
        %v653 = vsub.f32 %v566, %v608
        %v654 = vsub.f32 %v519, %v611
        %v655 = vsub.f32 %v568, %v611
        %v656 = vsub.f32 %v522, %v614
        %v657 = vsub.f32 %v571, %v614
        %v658 = vsub.f32 %v524, %v617
        %v659 = vsub.f32 %v573, %v617
        %v660 = vsub.f32 %v527, %v620
        %v661 = vsub.f32 %v576, %v620
        %v662 = vsub.f32 %v529, %v623
        %v663 = vsub.f32 %v578, %v623
        %v664 = vsub.f32 %v532, %v626
        %v665 = vsub.f32 %v581, %v626
        %v666 = vsub.f32 %v534, %v629
        %v667 = vsub.f32 %v583, %v629
        %v668 = vsub.f32 %v537, %v632
        %v669 = vsub.f32 %v586, %v632
        %v670 = vsub.f32 %v539, %v635
        %v671 = vsub.f32 %v588, %v635
        %v672 = vsub.f32 %v542, %v638
        %v673 = vsub.f32 %v591, %v638
        %v674 = vsub.f32 %v544, %v641
        %v675 = vsub.f32 %v593, %v641
        %v676 = vsub.f32 %v547, %v644
        %v677 = vsub.f32 %v596, %v644
        %v678 = vsub.f32 %v549, %v647
        %v679 = vsub.f32 %v598, %v647
        %v680 = vmul.f32 %v648, 1.442695
        %v681 = vpow.pop %v680
        %v682 = vmul.f32 %v649, 1.442695
        %v683 = vpow.pop %v682
        %v684 = vmul.f32 %v650, 1.442695
        %v685 = vpow.pop %v684
        %v686 = vmul.f32 %v651, 1.442695
        %v687 = vpow.pop %v686
        %v688 = vmul.f32 %v652, 1.442695
        %v689 = vpow.pop %v688
        %v690 = vmul.f32 %v653, 1.442695
        %v691 = vpow.pop %v690
        %v692 = vmul.f32 %v654, 1.442695
        %v693 = vpow.pop %v692
        %v694 = vmul.f32 %v655, 1.442695
        %v695 = vpow.pop %v694
        %v696 = vmul.f32 %v656, 1.442695
        %v697 = vpow.pop %v696
        %v698 = vmul.f32 %v657, 1.442695
        %v699 = vpow.pop %v698
        %v700 = vmul.f32 %v658, 1.442695
        %v701 = vpow.pop %v700
        %v702 = vmul.f32 %v659, 1.442695
        %v703 = vpow.pop %v702
        %v704 = vmul.f32 %v660, 1.442695
        %v705 = vpow.pop %v704
        %v706 = vmul.f32 %v661, 1.442695
        %v707 = vpow.pop %v706
        %v708 = vmul.f32 %v662, 1.442695
        %v709 = vpow.pop %v708
        %v710 = vmul.f32 %v663, 1.442695
        %v711 = vpow.pop %v710
        %v712 = vmul.f32 %v664, 1.442695
        %v713 = vpow.pop %v712
        %v714 = vmul.f32 %v665, 1.442695
        %v715 = vpow.pop %v714
        %v716 = vmul.f32 %v666, 1.442695
        %v717 = vpow.pop %v716
        %v718 = vmul.f32 %v667, 1.442695
        %v719 = vpow.pop %v718
        %v720 = vmul.f32 %v668, 1.442695
        %v721 = vpow.pop %v720
        %v722 = vmul.f32 %v669, 1.442695
        %v723 = vpow.pop %v722
        %v724 = vmul.f32 %v670, 1.442695
        %v725 = vpow.pop %v724
        %v726 = vmul.f32 %v671, 1.442695
        %v727 = vpow.pop %v726
        %v728 = vmul.f32 %v672, 1.442695
        %v729 = vpow.pop %v728
        %v730 = vmul.f32 %v673, 1.442695
        %v731 = vpow.pop %v730
        %v732 = vmul.f32 %v674, 1.442695
        %v733 = vpow.pop %v732
        %v734 = vmul.f32 %v675, 1.442695
        %v735 = vpow.pop %v734
        %v736 = vmul.f32 %v676, 1.442695
        %v737 = vpow.pop %v736
        %v738 = vmul.f32 %v677, 1.442695
        %v739 = vpow.pop %v738
        %v740 = vmul.f32 %v678, 1.442695
        %v741 = vpow.pop %v740
        %v742 = vmul.f32 %v679, 1.442695
        %v743 = vpow.pop %v742
        %v744 = vadd.f32 %v681, %v683
        %745 = vadd.xlane.f32.xlu0 %v744
        %v746 = vpop.xlane.xlu0 %745
        %v747 = vadd.f32 %v685, %v687
        %748 = vadd.xlane.f32.xlu0 %v747
        %v749 = vpop.xlane.xlu0 %748
        %v750 = vadd.f32 %v689, %v691
        %751 = vadd.xlane.f32.xlu0 %v750
        %v752 = vpop.xlane.xlu0 %751
        %v753 = vadd.f32 %v693, %v695
        %754 = vadd.xlane.f32.xlu0 %v753
        %v755 = vpop.xlane.xlu0 %754
        %v756 = vadd.f32 %v697, %v699
        %757 = vadd.xlane.f32.xlu0 %v756
        %v758 = vpop.xlane.xlu0 %757
        %v759 = vadd.f32 %v701, %v703
        %760 = vadd.xlane.f32.xlu0 %v759
        %v761 = vpop.xlane.xlu0 %760
        %v762 = vadd.f32 %v705, %v707
        %763 = vadd.xlane.f32.xlu0 %v762
        %v764 = vpop.xlane.xlu0 %763
        %v765 = vadd.f32 %v709, %v711
        %766 = vadd.xlane.f32.xlu0 %v765
        %v767 = vpop.xlane.xlu0 %766
        %v768 = vadd.f32 %v713, %v715
        %769 = vadd.xlane.f32.xlu0 %v768
        %v770 = vpop.xlane.xlu0 %769
        %v771 = vadd.f32 %v717, %v719
        %772 = vadd.xlane.f32.xlu0 %v771
        %v773 = vpop.xlane.xlu0 %772
        %v774 = vadd.f32 %v721, %v723
        %775 = vadd.xlane.f32.xlu0 %v774
        %v776 = vpop.xlane.xlu0 %775
        %v777 = vadd.f32 %v725, %v727
        %778 = vadd.xlane.f32.xlu0 %v777
        %v779 = vpop.xlane.xlu0 %778
        %v780 = vadd.f32 %v729, %v731
        %781 = vadd.xlane.f32.xlu0 %v780
        %v782 = vpop.xlane.xlu0 %781
        %v783 = vadd.f32 %v733, %v735
        %784 = vadd.xlane.f32.xlu0 %v783
        %v785 = vpop.xlane.xlu0 %784
        %v786 = vadd.f32 %v737, %v739
        %787 = vadd.xlane.f32.xlu0 %v786
        %v788 = vpop.xlane.xlu0 %787
        %v789 = vadd.f32 %v741, %v743
        %790 = vadd.xlane.f32.xlu0 %v789
        %v791 = vpop.xlane.xlu0 %790
        %v792 = vrcp.pop %v746
        %v793 = vrcp.pop %v749
        %v794 = vrcp.pop %v752
        %v795 = vrcp.pop %v755
        %v796 = vrcp.pop %v758
        %v797 = vrcp.pop %v761
        %v798 = vrcp.pop %v764
        %v799 = vrcp.pop %v767
        %v800 = vrcp.pop %v770
        %v801 = vrcp.pop %v773
        %v802 = vrcp.pop %v776
        %v803 = vrcp.pop %v779
        %v804 = vrcp.pop %v782
        %v805 = vrcp.pop %v785
        %v806 = vrcp.pop %v788
        %v807 = vrcp.pop %v791
        %v808 = vmul.f32 %v681, %v792
        %v809 = vmul.f32 %v683, %v792
        %v810 = vmul.f32 %v685, %v793
        %v811 = vmul.f32 %v687, %v793
        %v812 = vmul.f32 %v689, %v794
        %v813 = vmul.f32 %v691, %v794
        %v814 = vmul.f32 %v693, %v795
        %v815 = vmul.f32 %v695, %v795
        %v816 = vmul.f32 %v697, %v796
        %v817 = vmul.f32 %v699, %v796
        %v818 = vmul.f32 %v701, %v797
        %v819 = vmul.f32 %v703, %v797
        %v820 = vmul.f32 %v705, %v798
        %v821 = vmul.f32 %v707, %v798
        %v822 = vmul.f32 %v709, %v799
        %v823 = vmul.f32 %v711, %v799
        %v824 = vmul.f32 %v713, %v800
        %v825 = vmul.f32 %v715, %v800
        %v826 = vmul.f32 %v717, %v801
        %v827 = vmul.f32 %v719, %v801
        %v828 = vmul.f32 %v721, %v802
        %v829 = vmul.f32 %v723, %v802
        %v830 = vmul.f32 %v725, %v803
        %v831 = vmul.f32 %v727, %v803
        %v832 = vmul.f32 %v729, %v804
        %v833 = vmul.f32 %v731, %v804
        %v834 = vmul.f32 %v733, %v805
        %v835 = vmul.f32 %v735, %v805
        %v836 = vmul.f32 %v737, %v806
        %v837 = vmul.f32 %v739, %v806
        %v838 = vmul.f32 %v741, %v807
        %v839 = vmul.f32 %v743, %v807
        %v840 = vld [vmem:[%s373] sm:$0xff]
        %v841 = vld [vmem:[%s373 + $0x8] sm:$0xff]
        %v842 = vld [vmem:[%s373 + $0x10] sm:$0xff]
        %v843 = vld [vmem:[%s373 + $0x18] sm:$0xff]
        %v844 = vpack.c.bf16 %v810, %v808
        %v845 = vpack.c.bf16 %v811, %v809
        %v846 = vpack.c.bf16 %v814, %v812
        %v847 = vpack.c.bf16 %v815, %v813
        %v848 = vpack.c.bf16 %v818, %v816
        %v849 = vpack.c.bf16 %v819, %v817
        %v850 = vpack.c.bf16 %v822, %v820
        %v851 = vpack.c.bf16 %v823, %v821
        %v852 = vpack.c.bf16 %v826, %v824
        %v853 = vpack.c.bf16 %v827, %v825
        %v854 = vpack.c.bf16 %v830, %v828
        %v855 = vpack.c.bf16 %v831, %v829
        %v856 = vpack.c.bf16 %v834, %v832
        %v857 = vpack.c.bf16 %v835, %v833
        %v858 = vpack.c.bf16 %v838, %v836
        %v859 = vpack.c.bf16 %v839, %v837
        %v864 = vunpack.c.l.b16 %v840
        %v865 = vunpack.c.h.b16 %v840
        %v866 = vunpack.c.l.b16 %v841
        %v867 = vunpack.c.h.b16 %v841
        %v868 = vunpack.c.l.b16 %v842
        %v869 = vunpack.c.h.b16 %v842
        %v870 = vunpack.c.l.b16 %v843
        %v871 = vunpack.c.h.b16 %v843
        %v872 = vpack.c.b16 %v866, %v864
        %v873 = vpack.c.b16 %v867, %v865
        %v874 = vpack.c.b16 %v870, %v868
        %v875 = vpack.c.b16 %v871, %v869
        %880 = vmatpush.bf16.xpose.msra.mxu0 %v858
        %881 = vmatpush.bf16.xpose.msra.mxu0 %v856
        %882 = vmatpush.bf16.xpose.msra.mxu0 %v854
        %883 = vmatpush.bf16.xpose.msra.mxu0 %v852
        %884 = vmatpush.bf16.xpose.msra.mxu0 %v850
        %885 = vmatpush.bf16.xpose.msra.mxu0 %v848
        %886 = vmatpush.bf16.xpose.msra.mxu0 %v846
        %887 = vmatpush.bf16.xpose.msra.mxu0 %v844
        %888 = vmatmul.bf16.gmra.mxu0 %v872
        %v889 = vpop.f32.mrf.mxu0
        %v890 = vadd.f32 0.0, %v889
        %v891 = vpop.f32.mrf.mxu0
        %v892 = vadd.f32 0.0, %v891
        %893 = vmatmul.bf16.gmra.mxu0 %v874
        %v894 = vpop.f32.mrf.mxu0
        %v895 = vadd.f32 0.0, %v894
        %v896 = vpop.f32.mrf.mxu0
        %v897 = vadd.f32 0.0, %v896
        %898 = vdwg.mxu0
        %899 = vmatpush.bf16.xpose.msra.mxu0 %v859
        %900 = vmatpush.bf16.xpose.msra.mxu0 %v857
        %901 = vmatpush.bf16.xpose.msra.mxu0 %v855
        %902 = vmatpush.bf16.xpose.msra.mxu0 %v853
        %903 = vmatpush.bf16.xpose.msra.mxu0 %v851
        %904 = vmatpush.bf16.xpose.msra.mxu0 %v849
        %905 = vmatpush.bf16.xpose.msra.mxu0 %v847
        %906 = vmatpush.bf16.xpose.msra.mxu0 %v845
        %907 = vmatmul.bf16.gmra.mxu0 %v873
        %v908 = vpop.f32.mrf.mxu0
        %v909 = vadd.f32 %v890, %v908
        %v910 = vpop.f32.mrf.mxu0
        %v911 = vadd.f32 %v892, %v910
        %912 = vmatmul.bf16.gmra.mxu0 %v875
        %v913 = vpop.f32.mrf.mxu0
        %v914 = vadd.f32 %v895, %v913
        %v915 = vpop.f32.mrf.mxu0
        %v916 = vadd.f32 %v897, %v915
        %917 = vdwg.mxu0
        %s918 = sld [smem:[#allocation2]]
        %v919 = vstv %s918
        %v920 = vmul.f32 %v919, %v909
        %v921 = vmul.f32 %v919, %v911
        %v922 = vmul.f32 %v919, %v914
        %v923 = vmul.f32 %v919, %v916
        %v924 = vadd.f32 %v920, %v425
        %v925 = vadd.f32 %v921, %v426
        %v926 = vadd.f32 %v922, %v427
        %v927 = vadd.f32 %v923, %v428
        %928 = vst [vmem:[%s415] sm:$0xff] %v924
        %929 = vst [vmem:[%s415 + $0x8] sm:$0xff] %v925
        %930 = vst [vmem:[%s415 + $0x10] sm:$0xff] %v926
        %931 = vst [vmem:[%s415 + $0x18] sm:$0xff] %v927
        %932 = vst [vmem:[%s422] sm:$0xff] %v808
        %933 = vst [vmem:[%s422 + $0x8] sm:$0xff] %v809
        %934 = vst [vmem:[%s422 + $0x10] sm:$0xff] %v810
        %935 = vst [vmem:[%s422 + $0x18] sm:$0xff] %v811
        %936 = vst [vmem:[%s422 + $0x20] sm:$0xff] %v812
        %937 = vst [vmem:[%s422 + $0x28] sm:$0xff] %v813
        %938 = vst [vmem:[%s422 + $0x30] sm:$0xff] %v814
        %939 = vst [vmem:[%s422 + $0x38] sm:$0xff] %v815
        %940 = vst [vmem:[%s422 + $0x40] sm:$0xff] %v816
        %941 = vst [vmem:[%s422 + $0x48] sm:$0xff] %v817
        %942 = vst [vmem:[%s422 + $0x50] sm:$0xff] %v818
        %943 = vst [vmem:[%s422 + $0x58] sm:$0xff] %v819
        %944 = vst [vmem:[%s422 + $0x60] sm:$0xff] %v820
        %945 = vst [vmem:[%s422 + $0x68] sm:$0xff] %v821
        %946 = vst [vmem:[%s422 + $0x70] sm:$0xff] %v822
        %947 = vst [vmem:[%s422 + $0x78] sm:$0xff] %v823
        %948 = vst [vmem:[%s422 + $0x80] sm:$0xff] %v824
        %949 = vst [vmem:[%s422 + $0x88] sm:$0xff] %v825
        %950 = vst [vmem:[%s422 + $0x90] sm:$0xff] %v826
        %951 = vst [vmem:[%s422 + $0x98] sm:$0xff] %v827
        %952 = vst [vmem:[%s422 + $0xa0] sm:$0xff] %v828
        %953 = vst [vmem:[%s422 + $0xa8] sm:$0xff] %v829
        %954 = vst [vmem:[%s422 + $0xb0] sm:$0xff] %v830
        %955 = vst [vmem:[%s422 + $0xb8] sm:$0xff] %v831
        %956 = vst [vmem:[%s422 + $0xc0] sm:$0xff] %v832
        %957 = vst [vmem:[%s422 + $0xc8] sm:$0xff] %v833
        %958 = vst [vmem:[%s422 + $0xd0] sm:$0xff] %v834
        %959 = vst [vmem:[%s422 + $0xd8] sm:$0xff] %v835
        %960 = vst [vmem:[%s422 + $0xe0] sm:$0xff] %v836
        %961 = vst [vmem:[%s422 + $0xe8] sm:$0xff] %v837
        %962 = vst [vmem:[%s422 + $0xf0] sm:$0xff] %v838
        %963 = vst [vmem:[%s422 + $0xf8] sm:$0xff] %v839
        %s964 = sand.u32 %s183, 1
        %s965 = scalar_lea.sflag [#allocation5], %s964
        %s966 = sand.u32 %s183, 1
        %s967 = smul.addr %s966, 32
        %s968 = scalar_lea.vmem [#allocation11], %s967
        %s969 = sand.u32 %s211, 1
        %s970 = scalar_lea.sflag [#allocation13], %s969
        %s971 = sand.u32 %s211, 1
        %s972 = smul.addr %s971, 256
        %s973 = scalar_lea.vmem [#allocation12], %s972
        // Predicated region
        $region57: #{tpu_custom_call.1} parent=39 // pred_check
          %p974 = pneg %p193
        $region58: #{tpu_custom_call.1} parent=39 // pred_check_branch
          %976 = sbr.rel (%p974) target = $region60
        $region59: #{tpu_custom_call.1} parent=39 // pred_region
          %978 = vsyncadd %s965, 0
          %s979 = smul.addr %s38, 8
          %s980 = sadd.s32 %s39, %s979
          %s981 = smul.addr %s980, 8
          %s982 = scalar_lea.hbm %s5, %s981
          %s983 = sshll.u32 %s968, 4
          %s984 = int_to_ptr.vmem [resolvable:$true] %s983
          %s985 = sshll.u32 %s982, 4
          %s986 = int_to_ptr.hbm [resolvable:$true] %s985
          %991 = dma.vmem_to_hbm [thread:$0]  %s984, 512, %s986, %s965, 128, 256, 8
        $region60: #{tpu_custom_call.1} parent=39 // pred_fallthru
          _
        // Predicated region
        $region61: #{tpu_custom_call.1} parent=39 // pred_check
          %p992 = pneg %p221
        $region62: #{tpu_custom_call.1} parent=39 // pred_check_branch
          %994 = sbr.rel (%p992) target = $region64
        $region63: #{tpu_custom_call.1} parent=39 // pred_region
          %s995 = smul.u32 16, %s39
          %997 = vsyncadd %s970, 0
          %s998 = smul.addr %s995, 2
          %s999 = smul.addr %s38, 64
          %s1000 = sadd.s32 %s998, %s999
          %s1001 = smul.addr %s1000, 8
          %s1002 = scalar_lea.hbm %s6, %s1001
          %s1003 = sshll.u32 %s973, 4
          %s1004 = int_to_ptr.vmem [resolvable:$true] %s1003
          %s1005 = sshll.u32 %s1002, 4
          %s1006 = int_to_ptr.hbm [resolvable:$true] %s1005
          %1011 = dma.vmem_to_hbm [thread:$0]  %s1004, 4096, %s1006, %s970, 256, 256, 16
        $region64: #{tpu_custom_call.1} parent=39 // pred_fallthru
          _
      $region40: #{tpu_custom_call.1} parent=5 // pred_fallthru
        _
      %p1012 = scmp.le.s32.totalorder 2, %s29
      // Predicated region
      $region65: #{tpu_custom_call.1} parent=5 // pred_check
        %p1013 = pneg %p1012
      $region66: #{tpu_custom_call.1} parent=5 // pred_check_branch
        %1015 = sbr.rel (%p1013) target = $region68
      $region67: #{tpu_custom_call.1} parent=5 // pred_region
        %s1016 = ssub.s32 %s29, 2
        // Predicated region
        $region69: #{tpu_custom_call.1} parent=67 // pred_check
          %p1017 = pneg %p199
        $region70: #{tpu_custom_call.1} parent=67 // pred_check_branch
          %1019 = sbr.rel (%p1017) target = $region72
        $region71: #{tpu_custom_call.1} parent=67 // pred_region
          %s1020 = sand.u32 %s184, 1
          %s1021 = scalar_lea.sflag [#allocation5], %s1020
          %s1022 = sand.u32 %s184, 1
          %s1023 = smul.addr %s1022, 32
          %s1024 = scalar_lea.vmem [#allocation11], %s1023
          %1026 = dma.done %s1021, 512
        $region72: #{tpu_custom_call.1} parent=67 // pred_fallthru
          _
        // Predicated region
        $region73: #{tpu_custom_call.1} parent=67 // pred_check
          %p1027 = pneg %p227
        $region74: #{tpu_custom_call.1} parent=67 // pred_check_branch
          %1029 = sbr.rel (%p1027) target = $region76
        $region75: #{tpu_custom_call.1} parent=67 // pred_region
          %s1030 = sand.u32 %s212, 1
          %s1031 = scalar_lea.sflag [#allocation13], %s1030
          %s1032 = sand.u32 %s212, 1
          %s1033 = smul.addr %s1032, 256
          %s1034 = scalar_lea.vmem [#allocation12], %s1033
          %1036 = dma.done %s1031, 4096
        $region76: #{tpu_custom_call.1} parent=67 // pred_fallthru
          _
      $region68: #{tpu_custom_call.1} parent=5 // pred_fallthru
        _
    $region6: #{tpu_custom_call.1} parent=1 // loop_footer
      %s33 = sadd.s32 1, %s29
    $region7: #{tpu_custom_call.1} parent=1 // loop_footer_branch
      %28 = sbr.rel target = $region3
    $region8: #{tpu_custom_call.1} parent=1 // loop_exit
      _
    %1037 = vsyncpa [#allocation4], 1
    %s1038 = scalar_lea.sflag [#allocation4], 1
    %1039 = vsyncpa %s1038, 1
    %1040 = vsyncpa [#allocation7], 1
    %s1041 = scalar_lea.sflag [#allocation7], 1
    %1042 = vsyncpa %s1041, 1
    %1043 = vsyncpa [#allocation10], 1
    %s1044 = scalar_lea.sflag [#allocation10], 1
    %1045 = vsyncpa %s1044, 1
    %1046 = vsyncpa [#allocation5], 1
    %s1047 = scalar_lea.sflag [#allocation5], 1
    %1048 = vsyncpa %s1047, 1
    %1049 = vsyncpa [#allocation13], 1
    %s1050 = scalar_lea.sflag [#allocation13], 1
    %1051 = vsyncpa %s1050, 1

</llo_original>
